<compile_context>
chip_gen: v7x
topology: tpu7x:2x2x1
jax: 0.10.0
libtpu: 0.0.40
codegen_flags: <defaults>
</compile_context>

<pallas_src>
import jax
import jax.numpy as jnp
from jax.experimental import pallas as pl
from jax.experimental.pallas import tpu as pltpu


def _disc_kernel(x_ref, w1_ref, b1_ref, w2_ref, b2_ref, o_ref):
    # x_ref : (TB, F)    bf16   streaming batch tile
    # w1_ref: (F, H)     bf16   resident
    # b1_ref: (1, H)     f32    resident
    # w2_ref: (1, H)     f32    resident (row form of the (H,1) torch weight)
    # b2_ref: (1, 1)     f32    SMEM scalar
    # o_ref : (TB, 1)    f32
    h = jnp.dot(x_ref[...], w1_ref[...], preferred_element_type=jnp.float32)
    h = h + b1_ref[...]

    # LeakyReLU(negative_slope=0.2): single VALU max
    h = jnp.maximum(h, 0.2 * h)

    # Linear(256 -> 1) as elementwise multiply + cross-lane reduce (VPU/XLU, not MXU)
    logit = jnp.sum(h * w2_ref[...], axis=-1, keepdims=True) + b2_ref[0, 0]

    # Sigmoid: EUP exp + approximate EUP reciprocal
    o_ref[...] = pl.reciprocal(1.0 + jnp.exp(-logit), approx=True)


def discriminator_forward(img, w1, b1, w2, b2, *, block_b=512):
    """img: (B, c, r) float32. Returns validity (B, 1) float32.

    block_b: preferred batch tile size (>=256 fills the v6e/v7x MXU; multiple of 8).
    """
    B = img.shape[0]
    F, H = w1.shape
    x = img.reshape(B, -1).astype(jnp.bfloat16)
    assert x.shape[1] == F, (x.shape, F)

    # Batch tile: multiple of 8 sublanes, capped at block_b.
    if B >= block_b:
        tb = block_b
    else:
        tb = max(8, ((B + 7) // 8) * 8)
    padded_b = pl.cdiv(B, tb) * tb
    if padded_b != B:
        x = jnp.pad(x, ((0, padded_b - B), (0, 0)))

    out = pl.pallas_call(
        _disc_kernel,
        out_shape=jax.ShapeDtypeStruct((padded_b, 1), jnp.float32),
        grid=(padded_b // tb,),
        in_specs=[
            pl.BlockSpec((tb, F), lambda i: (i, 0)),          # x: streams per tile
            pl.BlockSpec((F, H), lambda i: (0, 0)),           # w1: resident
            pl.BlockSpec((1, H), lambda i: (0, 0)),           # b1: resident
            pl.BlockSpec((1, H), lambda i: (0, 0)),           # w2 (row): resident
            pl.BlockSpec(memory_space=pltpu.MemorySpace.SMEM),  # b2 scalar
        ],
        out_specs=pl.BlockSpec((tb, 1), lambda i: (i, 0)),
        compiler_params=pltpu.CompilerParams(
            dimension_semantics=("parallel",),
        ),
    )(
        x,
        w1.astype(jnp.bfloat16),
        b1,
        w2.reshape(1, H).astype(jnp.float32),
        b2.reshape(1, 1).astype(jnp.float32),
    )
    return out[:B]


def _reference_forward(img, w1, b1, w2, b2):
    """Pure-JAX f32 reference matching the PyTorch module."""
    x = img.reshape(img.shape[0], -1).astype(jnp.float32)
    h = x @ w1 + b1
    h = jnp.where(h > 0, h, 0.2 * h)
    logit = h @ w2 + b2
    return jax.nn.sigmoid(logit)


def init_params(key, c=6, r=16, hidden=256):
    """Deterministic synthetic parameters (torch Linear shapes, stored transposed)."""
    in_features = c * r
    k1, k2, k3, k4 = jax.random.split(key, 4)
    lim1 = 1.0 / jnp.sqrt(float(in_features))
    lim2 = 1.0 / jnp.sqrt(float(hidden))
    w1 = jax.random.uniform(k1, (in_features, hidden), jnp.float32, -lim1, lim1)
    b1 = jax.random.uniform(k2, (1, hidden), jnp.float32, -lim1, lim1)
    w2 = jax.random.uniform(k3, (hidden, 1), jnp.float32, -lim2, lim2)
    b2 = jax.random.uniform(k4, (1, 1), jnp.float32, -lim2, lim2)
    return w1, b1, w2, b2


if __name__ == "__main__":
    key = jax.random.PRNGKey(0)
    k_img, k_params, k_img2 = jax.random.split(key, 3)

    B, C, R = 8, 6, 16  # img -> (B, c=6, r=16); flattened feature dim = 96
    img = jax.random.normal(k_img, (B, C, R), dtype=jnp.float32)
    w1, b1, w2, b2 = init_params(k_params, c=C, r=R)

    validity = discriminator_forward(img, w1, b1, w2, b2)
    validity = jax.block_until_ready(validity)
    assert validity.shape == (B, 1)
    assert bool(jnp.all((validity >= 0.0) & (validity <= 1.0)))
    ref = _reference_forward(img, w1, b1, w2, b2)
    assert bool(jnp.max(jnp.abs(validity - ref)) < 3e-2), "mismatch vs f32 reference"

    # Larger, non-multiple batch to exercise the grid + padding path (grid=3).
    B2 = 300
    img2 = jax.random.normal(k_img2, (B2, C, R), dtype=jnp.float32)
    validity2 = discriminator_forward(img2, w1, b1, w2, b2, block_b=128)
    validity2 = jax.block_until_ready(validity2)
    assert validity2.shape == (B2, 1)
    ref2 = _reference_forward(img2, w1, b1, w2, b2)
    assert bool(jnp.max(jnp.abs(validity2 - ref2)) < 3e-2), "mismatch vs f32 reference (gridded)"

    print("KERNEL_OK")
</pallas_src>

<mosaic_0001>
module attributes {stable_mosaic.version = 11 : i64} {
  func.func @_disc_kernel(%arg0: i32, %arg1: memref<8x96xbf16, #tpu.memory_space<vmem>>, %arg2: memref<96x256xbf16, #tpu.memory_space<vmem>>, %arg3: memref<1x256xf32, #tpu.memory_space<vmem>>, %arg4: memref<1x256xf32, #tpu.memory_space<vmem>>, %arg5: memref<1x1xf32, #tpu.memory_space<smem>>, %arg6: memref<8x1xf32, #tpu.memory_space<vmem>>) attributes {dimension_semantics = [#tpu.dimension_semantics<parallel>], iteration_bounds = array<i64: 1>, scalar_prefetch = 0 : i64, scratch_operands = 0 : i64, tpu.core_type = #tpu.core_type<tc>, window_params = [{transform_indices = @transform_0, window_bounds = array<i64: 8, 96>}, {pipeline_mode = #tpu.pipeline_mode<synchronous>, transform_indices = @transform_1, window_bounds = array<i64: 96, 256>}, {pipeline_mode = #tpu.pipeline_mode<synchronous>, transform_indices = @transform_2, window_bounds = array<i64: 1, 256>}, {pipeline_mode = #tpu.pipeline_mode<synchronous>, transform_indices = @transform_3, window_bounds = array<i64: 1, 256>}, {transform_indices = @transform_4, window_bounds = array<i64: 1, 1>}, {transform_indices = @transform_5, window_bounds = array<i64: 8, 1>}]} {
    %c0 = arith.constant 0 : index
    %c0_0 = arith.constant 0 : index
    %0 = vector.load %arg1[%c0, %c0_0] : memref<8x96xbf16, #tpu.memory_space<vmem>>, vector<8x96xbf16>
    %c0_1 = arith.constant 0 : index
    %c0_2 = arith.constant 0 : index
    %1 = vector.load %arg2[%c0_1, %c0_2] : memref<96x256xbf16, #tpu.memory_space<vmem>>, vector<96x256xbf16>
    %cst = arith.constant dense<0.000000e+00> : vector<8x256xf32>
    %2 = tpu.matmul %0, %1, %cst {dimension_numbers = #tpu.dot_dimension_numbers<[1], [0], [0], [1], [0, 0, 1, 1], [], []>} : vector<8x96xbf16>, vector<96x256xbf16>, vector<8x256xf32> -> vector<8x256xf32>
    %c0_3 = arith.constant 0 : index
    %c0_4 = arith.constant 0 : index
    %3 = vector.load %arg3[%c0_3, %c0_4] : memref<1x256xf32, #tpu.memory_space<vmem>>, vector<1x256xf32>
    %4 = vector.broadcast %3 : vector<1x256xf32> to vector<8x256xf32>
    %5 = arith.addf %2, %4 : vector<8x256xf32>
    %cst_5 = arith.constant 2.000000e-01 : f32
    %6 = vector.broadcast %cst_5 : f32 to vector<8x256xf32>
    %7 = arith.mulf %6, %5 : vector<8x256xf32>
    %8 = arith.maximumf %5, %7 : vector<8x256xf32>
    %c0_6 = arith.constant 0 : index
    %c0_7 = arith.constant 0 : index
    %9 = vector.load %arg4[%c0_6, %c0_7] : memref<1x256xf32, #tpu.memory_space<vmem>>, vector<1x256xf32>
    %10 = vector.broadcast %9 : vector<1x256xf32> to vector<8x256xf32>
    %11 = arith.mulf %8, %10 : vector<8x256xf32>
    %cst_8 = arith.constant dense<0.000000e+00> : vector<8xf32>
    %12 = vector.multi_reduction <add>, %11, %cst_8 [1] : vector<8x256xf32> to vector<8xf32>
    %13 = vector.shape_cast %12 : vector<8xf32> to vector<8x1xf32>
    %c0_9 = arith.constant 0 : index
    %c0_10 = arith.constant 0 : index
    %14 = memref.load %arg5[%c0_9, %c0_10] : memref<1x1xf32, #tpu.memory_space<smem>>
    %15 = vector.broadcast %14 : f32 to vector<8x1xf32>
    %16 = arith.addf %13, %15 : vector<8x1xf32>
    %cst_11 = arith.constant 0.000000e+00 : f32
    %17 = vector.broadcast %cst_11 : f32 to vector<8x1xf32>
    %18 = arith.subf %17, %16 : vector<8x1xf32>
    %19 = math.exp %18 : vector<8x1xf32>
    %cst_12 = arith.constant 1.000000e+00 : f32
    %20 = vector.broadcast %cst_12 : f32 to vector<8x1xf32>
    %21 = arith.addf %20, %19 : vector<8x1xf32>
    %22 = tpu.reciprocal %21 {approx = true} : vector<8x1xf32> -> vector<8x1xf32>
    %c0_13 = arith.constant 0 : index
    %c0_14 = arith.constant 0 : index
    %23 = vector.load %arg6[%c0_13, %c0_14] : memref<8x1xf32, #tpu.memory_space<vmem>>, vector<8x1xf32>
    tpu.vector_store %arg6[%c0_13, %c0_14], %22 {strides = array<i32>} : memref<8x1xf32, #tpu.memory_space<vmem>>, vector<8x1xf32>,
    return
  }
  func.func @transform_0(%arg0: i32) -> (i32, i32) {
    %c0_i32 = arith.constant 0 : i32
    %c0_i32_0 = arith.constant 0 : i32
    return %arg0, %c0_i32 : i32, i32
  }
  func.func @transform_1(%arg0: i32) -> (i32, i32) {
    %c0_i32 = arith.constant 0 : i32
    %c0_i32_0 = arith.constant 0 : i32
    %c0_i32_1 = arith.constant 0 : i32
    return %c0_i32, %c0_i32_0 : i32, i32
  }
  func.func @transform_2(%arg0: i32) -> (i32, i32) {
    %c0_i32 = arith.constant 0 : i32
    %c0_i32_0 = arith.constant 0 : i32
    %c0_i32_1 = arith.constant 0 : i32
    return %c0_i32, %c0_i32_0 : i32, i32
  }
  func.func @transform_3(%arg0: i32) -> (i32, i32) {
    %c0_i32 = arith.constant 0 : i32
    %c0_i32_0 = arith.constant 0 : i32
    %c0_i32_1 = arith.constant 0 : i32
    return %c0_i32, %c0_i32_0 : i32, i32
  }
  func.func @transform_4(%arg0: i32) -> (i32, i32) {
    %c0_i32 = arith.constant 0 : i32
    %c0_i32_0 = arith.constant 0 : i32
    %c0_i32_1 = arith.constant 0 : i32
    return %c0_i32, %c0_i32_0 : i32, i32
  }
  func.func @transform_5(%arg0: i32) -> (i32, i32) {
    %c0_i32 = arith.constant 0 : i32
    %c0_i32_0 = arith.constant 0 : i32
    return %arg0, %c0_i32 : i32, i32
  }
}

</mosaic_0001>

<llo_original>
// kernel: tpu_custom_call.1
$region0: #{tpu_custom_call.1}
  #allocation0 [shape = 'u32[]', space=smem, size = 0x4, offset = 0x4, fixed_abs, tag = 'smem constant byte address 0x4 - core index']
  #allocation1 [shape = 'u32[144,128]{1,0:T(1,128)}', space=vmem, size = 0x12000, scoped, tag = 'internal scratch']
  #allocation2 [shape = 'f32[1,1]{1,0:T(1,128)S(6)}', space=smem, size = 0x200, scoped, tag = 'scoped memory for tpu_custom_call.1']
  %s0 = inlined_call_operand.hbm [shape: bf16[8,96], index: 0, kind: input, shape index: {}]
  %s1 = inlined_call_operand.hbm [shape: bf16[96,256], index: 1, kind: input, shape index: {}]
  %s2 = inlined_call_operand.vmem [shape: f32[1,256], index: 2, kind: input, shape index: {}]
  %s3 = inlined_call_operand.vmem [shape: f32[1,256], index: 3, kind: input, shape index: {}]
  %s4 = inlined_call_operand.<no memory space> [shape: f32[1,1], index: 4, kind: input, shape index: {}]
  %s5 = inlined_call_operand.vmem [shape: f32[8,1], index: 5, kind: output, shape index: {}]
  %s6 = sld [smem:[#allocation0]]
  $region38: #{tpu_custom_call.1} parent=0
    _
  %s8 = ssub.s32 1, %s6
  %s9 = scalar_select 0, %s8, %s6
  %10 = sst [smem:[#allocation2]] %s4
  $region1: #{tpu_custom_call.1} parent=0
    #allocation3 [shape = 'u8[2048]{0}', space=vmem, size = 0x800, scoped, tag = 'input window, operand 0, single buffered']
    #allocation4 [shape = 's32[1]{0}', space=sflag, size = 0x4, scoped, tag = 'scoped memory for tpu_custom_call.1']
    #allocation5 [shape = 'u8[49152]{0}', space=vmem, size = 0xc000, scoped, tag = 'input window, operand 1, single buffered']
    #allocation6 [shape = 's32[1]{0}', space=sflag, size = 0x4, scoped, tag = 'scoped memory for tpu_custom_call.1']
    %11 = vsyncpa [#allocation4], 0
    %12 = vsyncpa [#allocation6], 0
    // Predicated region
    $region2: #{tpu_custom_call.1} parent=1 // pred_check
      _
    $region3: #{tpu_custom_call.1} parent=1 // pred_check_branch
      %14 = sbr.rel (0) target = $region5
    $region4: #{tpu_custom_call.1} parent=1 // pred_region
      %s16 = ssub.s32 64, 64
      %17 = vsyncadd [#allocation4], %s16
      %s19 = sshll.u32 [#allocation3], 4
      %s20 = int_to_ptr.vmem [resolvable:$true] %s19
      %22 = dma.hbm_to_vmem [thread:$0]  %s0, 64, %s20, [#allocation4]
    $region5: #{tpu_custom_call.1} parent=1 // pred_fallthru
      _
    // Predicated region
    $region6: #{tpu_custom_call.1} parent=1 // pred_check
      _
    $region7: #{tpu_custom_call.1} parent=1 // pred_check_branch
      %24 = sbr.rel (0) target = $region9
    $region8: #{tpu_custom_call.1} parent=1 // pred_region
      %s26 = ssub.s32 1536, 1536
      %27 = vsyncadd [#allocation6], %s26
      %s28 = sshll.u32 [#allocation5], 4
      %s29 = int_to_ptr.vmem [resolvable:$true] %s28
      %34 = dma.hbm_to_vmem [thread:$0]  %s1, 1536, %s29, [#allocation6], 128, 128, 8
    $region9: #{tpu_custom_call.1} parent=1 // pred_fallthru
      _
    // Predicated region
    $region10: #{tpu_custom_call.1} parent=1 // pred_check
      _
    $region11: #{tpu_custom_call.1} parent=1 // pred_check_branch
      %36 = sbr.rel (0) target = $region13
    $region12: #{tpu_custom_call.1} parent=1 // pred_region
      _
    $region13: #{tpu_custom_call.1} parent=1 // pred_fallthru
      _
    // Predicated region
    $region14: #{tpu_custom_call.1} parent=1 // pred_check
      _
    $region15: #{tpu_custom_call.1} parent=1 // pred_check_branch
      %38 = sbr.rel (0) target = $region17
    $region16: #{tpu_custom_call.1} parent=1 // pred_region
      _
    $region17: #{tpu_custom_call.1} parent=1 // pred_fallthru
      _
    // Predicated region
    $region18: #{tpu_custom_call.1} parent=1 // pred_check
      _
    $region19: #{tpu_custom_call.1} parent=1 // pred_check_branch
      %40 = sbr.rel (0) target = $region21
    $region20: #{tpu_custom_call.1} parent=1 // pred_region
      _
    $region21: #{tpu_custom_call.1} parent=1 // pred_fallthru
      _
    // Predicated region
    $region22: #{tpu_custom_call.1} parent=1 // pred_check
      _
    $region23: #{tpu_custom_call.1} parent=1 // pred_check_branch
      %42 = sbr.rel (0) target = $region25
    $region24: #{tpu_custom_call.1} parent=1 // pred_region
      %43 = dma.done [#allocation4], 64
    $region25: #{tpu_custom_call.1} parent=1 // pred_fallthru
      _
    // Predicated region
    $region26: #{tpu_custom_call.1} parent=1 // pred_check
      _
    $region27: #{tpu_custom_call.1} parent=1 // pred_check_branch
      %45 = sbr.rel (0) target = $region29
    $region28: #{tpu_custom_call.1} parent=1 // pred_region
      %46 = dma.done [#allocation6], 1536
    $region29: #{tpu_custom_call.1} parent=1 // pred_fallthru
      _
    %v48 = vld [vmem:[#allocation3] sm:$0xf]
    %v49 = vld [vmem:[#allocation5] sm:$0xff]
    %v50 = vld [vmem:[#allocation5 + $0x8] sm:$0xff]
    %v51 = vld [vmem:[#allocation5 + $0x10] sm:$0xff]
    %v52 = vld [vmem:[#allocation5 + $0x18] sm:$0xff]
    %v53 = vld [vmem:[#allocation5 + $0x20] sm:$0xff]
    %v54 = vld [vmem:[#allocation5 + $0x28] sm:$0xff]
    %v55 = vld [vmem:[#allocation5 + $0x30] sm:$0xff]
    %v56 = vld [vmem:[#allocation5 + $0x38] sm:$0xff]
    %v57 = vld [vmem:[#allocation5 + $0x40] sm:$0xff]
    %v58 = vld [vmem:[#allocation5 + $0x48] sm:$0xff]
    %v59 = vld [vmem:[#allocation5 + $0x50] sm:$0xff]
    %v60 = vld [vmem:[#allocation5 + $0x58] sm:$0xff]
    %v61 = vld [vmem:[%s2] sm:$0x3]
    %v63 = vlaneseq
    %v64 = vshrl.u32 %v63, 7
    %v65 = vsub.s32 0, %v64
    %v66 = vrot.slane %v61, %v65
    %v67 = vlaneseq
    %v68 = vshrl.u32 %v67, 7
    %v69 = vsub.s32 1, %v68
    %v70 = vrot.slane %v61, %v69
    %v85 = vunpack.c.l.b16 %v49
    %v86 = vunpack.c.h.b16 %v49
    %v87 = vunpack.c.l.b16 %v50
    %v88 = vunpack.c.h.b16 %v50
    %v89 = vunpack.c.l.b16 %v51
    %v90 = vunpack.c.h.b16 %v51
    %v91 = vunpack.c.l.b16 %v52
    %v92 = vunpack.c.h.b16 %v52
    %v93 = vunpack.c.l.b16 %v53
    %v94 = vunpack.c.h.b16 %v53
    %v95 = vunpack.c.l.b16 %v54
    %v96 = vunpack.c.h.b16 %v54
    %v97 = vunpack.c.l.b16 %v55
    %v98 = vunpack.c.h.b16 %v55
    %v99 = vunpack.c.l.b16 %v56
    %v100 = vunpack.c.h.b16 %v56
    %v101 = vunpack.c.l.b16 %v57
    %v102 = vunpack.c.h.b16 %v57
    %v103 = vunpack.c.l.b16 %v58
    %v104 = vunpack.c.h.b16 %v58
    %v105 = vunpack.c.l.b16 %v59
    %v106 = vunpack.c.h.b16 %v59
    %v107 = vunpack.c.l.b16 %v60
    %v108 = vunpack.c.h.b16 %v60
    %v109 = vpack.c.b16 %v87, %v85
    %v110 = vpack.c.b16 %v88, %v86
    %v111 = vpack.c.b16 %v91, %v89
    %v112 = vpack.c.b16 %v92, %v90
    %v113 = vpack.c.b16 %v95, %v93
    %v114 = vpack.c.b16 %v96, %v94
    %v115 = vpack.c.b16 %v99, %v97
    %v116 = vpack.c.b16 %v100, %v98
    %v117 = vpack.c.b16 %v103, %v101
    %v118 = vpack.c.b16 %v104, %v102
    %v119 = vpack.c.b16 %v107, %v105
    %v120 = vpack.c.b16 %v108, %v106
    %vm133 = vcmask 785408
    %v135 = vsel %vm133, %v48, 0
    %137 = vmatprep.subr.bf16.mxu0 %v110
    %138 = vmatpush1.bf16.msra.mxu0 %v109
    %139 = vmatprep.subr.bf16.mxu0 %v112
    %140 = vmatpush1.bf16.msra.mxu0 %v111
    %141 = vmatprep.subr.bf16.mxu0 %v114
    %142 = vmatpush1.bf16.msra.mxu0 %v113
    %143 = vmatprep.subr.bf16.mxu0 %v116
    %144 = vmatpush1.bf16.msra.mxu0 %v115
    %145 = vmatprep.subr.bf16.mxu0 %v118
    %146 = vmatpush1.bf16.msra.mxu0 %v117
    %147 = vmatprep.subr.bf16.mxu0 %v120
    %148 = vmatpush1.bf16.msra.mxu0 %v119
    %149 = vmatprep.subr.bf16.mxu0 0
    %150 = vmatpush1.bf16.msra.mxu0 0
    %151 = vmatprep.subr.bf16.mxu0 0
    %152 = vmatpush1.bf16.msra.mxu0 0
    %153 = vmatprep.subr.bf16.mxu0 0
    %154 = vmatpush1.bf16.msra.mxu0 0
    %155 = vmatprep.subr.bf16.mxu0 0
    %156 = vmatpush1.bf16.msra.mxu0 0
    %157 = vmatprep.subr.bf16.mxu0 0
    %158 = vmatpush1.bf16.msra.mxu0 0
    %159 = vmatprep.subr.bf16.mxu0 0
    %160 = vmatpush1.bf16.msra.mxu0 0
    %161 = vmatprep.subr.bf16.mxu0 0
    %162 = vmatpush1.bf16.msra.mxu0 0
    %163 = vmatprep.subr.bf16.mxu0 0
    %164 = vmatpush1.bf16.msra.mxu0 0
    %165 = vmatprep.subr.bf16.mxu0 0
    %166 = vmatpush1.bf16.msra.mxu0 0
    %167 = vmatprep.subr.bf16.mxu0 0
    %168 = vmatpush1.bf16.msra.mxu0 0
    %169 = vmatprep.mubr.bf16.mxu0 0
    %170 = vmatmul.mubr.bf16.gmra.mrb[0].mxu0 %v135
    %v171 = vpop.f32.mrb[0].mxu0
    %v172 = vadd.f32 %v66, %v171
    %v173 = vpop.f32.mrb[0].mxu0
    %v174 = vadd.f32 %v70, %v173
    %v175 = vpop.f32.mrb[0].mxu0
    %v176 = vpop.f32.mrb[0].mxu0
    %177 = vdwg.mxu0
    %v178 = vmul.f32 %v172, 0.2
    %v179 = vmul.f32 %v174, 0.2
    %v180 = vmax.f32 %v172, %v178
    %v181 = vmax.f32 %v174, %v179
    %v182 = vld [vmem:[%s3] sm:$0x3]
    %v184 = vlaneseq
    %v185 = vshrl.u32 %v184, 7
    %v186 = vsub.s32 0, %v185
    %v187 = vrot.slane %v182, %v186
    %v188 = vlaneseq
    %v189 = vshrl.u32 %v188, 7
    %v190 = vsub.s32 1, %v189
    %v191 = vrot.slane %v182, %v190
    %v194 = vmul.f32 %v180, %v187
    %v195 = vmul.f32 %v181, %v191
    %v196 = vadd.f32 %v194, %v195
    %197 = vadd.xlane.f32.xlu0 %v196
    %v198 = vpop.xlane.xlu0 %197
    %s199 = sld [smem:[#allocation2]]
    %v200 = vstv %s199
    %v201 = vadd.f32 %v198, %v200
    %v202 = vsub.f32 0.0, %v201
    %v203 = vmul.f32 %v202, 1.442695
    %v204 = vpow.pop %v203
    %v205 = vadd.f32 %v204, 1.0
    %v206 = vrcp.pop %v205
    %vm207 = vcmask 7168
    %208 = vst.msk [vmem:[%s5] sm:$0xff] %vm207, %v206
    // Predicated region
    $region30: #{tpu_custom_call.1} parent=1 // pred_check
      _
    $region31: #{tpu_custom_call.1} parent=1 // pred_check_branch
      %210 = sbr.rel (0) target = $region33
    $region32: #{tpu_custom_call.1} parent=1 // pred_region
      _
    $region33: #{tpu_custom_call.1} parent=1 // pred_fallthru
      _
    // Predicated region
    $region34: #{tpu_custom_call.1} parent=1 // pred_check
      _
    $region35: #{tpu_custom_call.1} parent=1 // pred_check_branch
      %212 = sbr.rel (0) target = $region37
    $region36: #{tpu_custom_call.1} parent=1 // pred_region
      _
    $region37: #{tpu_custom_call.1} parent=1 // pred_fallthru
      _
    %213 = vsyncpa [#allocation4], 1
    %214 = vsyncpa [#allocation6], 1

</llo_original>
